<compile_context>
chip_gen: v6e
topology: v6e:2x2x1
jax: 0.10.0
libtpu: 0.0.40
codegen_flags: <defaults>
</compile_context>

<pallas_src>
import functools

import jax
import jax.numpy as jnp
from jax.experimental import pallas as pl
from jax.experimental.pallas import tpu as pltpu

_H1_PAD = 512    # 400 -> 512 (multiple of 128, dense on the MXU)
_H2_PAD = 384    # 300 -> 384
_MAX_BT = 1024   # max batch tile


def _discriminator_kernel(x_ref, w1_ref, b1_ref, w2_ref, b2_ref,
                          w3_ref, b3_ref, o_ref, *, tanh_dtype):
    # ---- layer 1: single dense K=128 bf16 matmul, f32 accumulation ----
    z1 = (jnp.dot(x_ref[...], w1_ref[...], preferred_element_type=jnp.float32)
          + b1_ref[...])
    h1 = jnp.tanh(z1.astype(tanh_dtype)).astype(jnp.bfloat16)

    # ---- layer 2: bf16 in, f32 accumulation ----
    z2 = (jnp.dot(h1, w2_ref[...], preferred_element_type=jnp.float32)
          + b2_ref[...])
    h2 = jnp.tanh(z2.astype(tanh_dtype))

    # ---- layer 3: N=1 output -> VPU multiply + lane reduce (skip the MXU) ----
    z3 = jnp.sum(h2.astype(jnp.float32) * w3_ref[...], axis=-1, keepdims=True)
    z3 = z3 + b3_ref[...]                              # (bt, 1) f32
    # Transpose to a lane-dense (1, bt) row so the writeback is a dense vst
    # instead of masked 1/128-lane vst.msk partial stores.
    o_ref[...] = jax.nn.sigmoid(jnp.transpose(z3)).astype(o_ref.dtype)


def _pick_batch_tile(B):
    # Whole batch for small B; otherwise at least 2 tiles (both v7x TCs get
    # work), capped at _MAX_BT, and always a multiple of 128 when tiled.
    if B <= 256:
        return B
    return min(_MAX_BT, 128 * pl.cdiv(pl.cdiv(B, 2), 128))


@functools.partial(jax.jit, static_argnames=("tanh_dtype",))
def discriminator_forward(state, action, kernel_params, tanh_dtype=None):
    """state: (B, S) f32, action: (B, A) f32 -> (B, 1) f32 in [0, 1]."""
    w1, b1, w2, b2, w3_row, b3 = kernel_params
    B, S = state.shape
    A = action.shape[1]
    K = w1.shape[0]                       # K already padded to a multiple of 128

    if tanh_dtype is None:
        kind = jax.devices()[0].device_kind.lower()
        # bf16 EUP exists on v6e / v7x; keep transcendentals f32 on v5e/older.
        tanh_dtype = (jnp.bfloat16
                      if any(t in kind for t in ("v6", "v7", "7x"))
                      else jnp.float32)

    # One fused wrapper op (concat + pad K to 128 + bf16 cast) replaces the
    # previous two standalone astype passes; kernel LHS is lane-dense.
    x = jnp.concatenate([state, action], axis=1)
    x = jnp.pad(x, ((0, 0), (0, K - (S + A)))).astype(jnp.bfloat16)

    bt = _pick_batch_tile(B)
    nt = pl.cdiv(B, bt)

    def resident(shape):
        # Same block every grid step -> stays VMEM-resident, DMA'd once.
        return pl.BlockSpec(shape, lambda i: (0,) * len(shape))

    flops = 2 * B * (K * _H1_PAD + _H1_PAD * _H2_PAD + _H2_PAD)
    transcendentals = B * (_H1_PAD + _H2_PAD + 1)
    bytes_accessed = (x.size * 2 + w1.size * 2 + w2.size * 2
                      + 4 * (b1.size + b2.size + w3_row.size + b3.size)
                      + 4 * B)

    kernel = functools.partial(_discriminator_kernel, tanh_dtype=tanh_dtype)

    out_row = pl.pallas_call(
        kernel,
        out_shape=jax.ShapeDtypeStruct((1, nt * bt), jnp.float32),
        grid=(nt,),
        in_specs=[
            pl.BlockSpec((bt, K), lambda i: (i, 0)),        # batch tile of x
            resident(w1.shape), resident(b1.shape),
            resident(w2.shape), resident(b2.shape),
            resident(w3_row.shape), resident(b3.shape),
        ],
        out_specs=pl.BlockSpec((1, bt), lambda i: (0, i)),  # lane-dense row
        compiler_params=pltpu.CompilerParams(
            dimension_semantics=("parallel",),   # shard batch tiles across TCs
            vmem_limit_bytes=32 * 1024 * 1024,   # fits v7x's 64 MiB physical
        ),
        cost_estimate=pl.CostEstimate(flops=flops,
                                      transcendentals=transcendentals,
                                      bytes_accessed=bytes_accessed),
    )(x, w1, b1, w2, b2, w3_row, b3)

    return out_row[0, :B].reshape(B, 1)


def init_params(key, state_dim, action_dim):
    """f32 reference parameters, nn.Linear-style init.
    Weights stored as (in_features, out_features); biases as (1, out)."""
    dims = [(state_dim + action_dim, 400), (400, 300), (300, 1)]
    params = []
    for fan_in, fan_out in dims:
        key, kw, kb = jax.random.split(key, 3)
        bound = 1.0 / (fan_in ** 0.5)
        w = jax.random.uniform(kw, (fan_in, fan_out), jnp.float32,
                               minval=-bound, maxval=bound)
        b = jax.random.uniform(kb, (1, fan_out), jnp.float32,
                               minval=-bound, maxval=bound)
        params += [w, b]
    return tuple(params)


def prepare_kernel_params(raw_params):
    """Pad K to a multiple of 128 and hidden dims to MXU-friendly sizes,
    cast matmul weights to bf16, and turn W3 into a broadcast f32 row."""
    w1, b1, w2, b2, w3, b3 = raw_params
    k_in = w1.shape[0]
    k_pad = -(-k_in // 128) * 128

    def pad_to(x, shape):
        return jnp.pad(x, [(0, t - s) for s, t in zip(x.shape, shape)])

    w1p = pad_to(w1, (k_pad, _H1_PAD)).astype(jnp.bfloat16)     # (128, 512)
    b1p = pad_to(b1, (1, _H1_PAD))                              # (1, 512) f32
    w2p = pad_to(w2, (_H1_PAD, _H2_PAD)).astype(jnp.bfloat16)   # (512, 384)
    b2p = pad_to(b2, (1, _H2_PAD))                              # (1, 384) f32
    w3_row = pad_to(w3.T, (1, _H2_PAD))                         # (1, 384) f32
    return (w1p, b1p, w2p, b2p, w3_row, b3)


if __name__ == "__main__":
    key = jax.random.PRNGKey(0)
    state_dim, action_dim, batch = 16, 8, 2

    k1, k2, k3 = jax.random.split(key, 3)
    state = jax.random.normal(k1, (batch, state_dim), jnp.float32)
    action = jax.random.normal(k2, (batch, action_dim), jnp.float32)
    raw_params = init_params(k3, state_dim, action_dim)
    kernel_params = prepare_kernel_params(raw_params)

    def ref_forward(s, a):
        # pure-JAX f32 reference of the original module semantics
        xw = jnp.concatenate([s, a], axis=1)
        w1, b1, w2, b2, w3, b3 = raw_params
        h1 = jnp.tanh(jnp.dot(xw, w1) + b1)
        h2 = jnp.tanh(jnp.dot(h1, w2) + b2)
        return jax.nn.sigmoid(jnp.dot(h2, w3) + b3)

    # small smoke test (single tile)
    out = discriminator_forward(state, action, kernel_params)
    jax.block_until_ready(out)
    ref = ref_forward(state, action)
    assert out.shape == (batch, 1)
    # bf16 matmul (and bf16 tanh on v6e/v7x) -> loosened tolerance vs f32 ref
    assert jnp.allclose(out, ref, atol=2e-2, rtol=2e-2)

    # exercise the multi-tile + partial-final-tile + lane-dense-output path
    big_b = 300
    kb1, kb2 = jax.random.split(jax.random.PRNGKey(1))
    state_b = jax.random.normal(kb1, (big_b, state_dim), jnp.float32)
    action_b = jax.random.normal(kb2, (big_b, action_dim), jnp.float32)
    out_b = discriminator_forward(state_b, action_b, kernel_params)
    jax.block_until_ready(out_b)
    ref_b = ref_forward(state_b, action_b)
    assert out_b.shape == (big_b, 1)
    assert jnp.allclose(out_b, ref_b, atol=2e-2, rtol=2e-2)

    print("KERNEL_OK")
</pallas_src>

<mosaic_0001>
module attributes {stable_mosaic.version = 11 : i64} {
  func.func @_discriminator_kernel(%arg0: i32, %arg1: memref<2x128xbf16, #tpu.memory_space<vmem>>, %arg2: memref<128x512xbf16, #tpu.memory_space<vmem>>, %arg3: memref<1x512xf32, #tpu.memory_space<vmem>>, %arg4: memref<512x384xbf16, #tpu.memory_space<vmem>>, %arg5: memref<1x384xf32, #tpu.memory_space<vmem>>, %arg6: memref<1x384xf32, #tpu.memory_space<vmem>>, %arg7: memref<1x1xf32, #tpu.memory_space<vmem>>, %arg8: memref<1x2xf32, #tpu.memory_space<vmem>>) attributes {dimension_semantics = [#tpu.dimension_semantics<parallel>], iteration_bounds = array<i64: 1>, scalar_prefetch = 0 : i64, scratch_operands = 0 : i64, tpu.core_type = #tpu.core_type<tc>, window_params = [{transform_indices = @transform_0, window_bounds = array<i64: 2, 128>}, {pipeline_mode = #tpu.pipeline_mode<synchronous>, transform_indices = @transform_1, window_bounds = array<i64: 128, 512>}, {pipeline_mode = #tpu.pipeline_mode<synchronous>, transform_indices = @transform_2, window_bounds = array<i64: 1, 512>}, {pipeline_mode = #tpu.pipeline_mode<synchronous>, transform_indices = @transform_3, window_bounds = array<i64: 512, 384>}, {pipeline_mode = #tpu.pipeline_mode<synchronous>, transform_indices = @transform_4, window_bounds = array<i64: 1, 384>}, {pipeline_mode = #tpu.pipeline_mode<synchronous>, transform_indices = @transform_5, window_bounds = array<i64: 1, 384>}, {pipeline_mode = #tpu.pipeline_mode<synchronous>, transform_indices = @transform_6, window_bounds = array<i64: 1, 1>}, {transform_indices = @transform_7, window_bounds = array<i64: 1, 2>}]} {
    %c0 = arith.constant 0 : index
    %c0_0 = arith.constant 0 : index
    %0 = vector.load %arg1[%c0, %c0_0] : memref<2x128xbf16, #tpu.memory_space<vmem>>, vector<2x128xbf16>
    %c0_1 = arith.constant 0 : index
    %c0_2 = arith.constant 0 : index
    %1 = vector.load %arg2[%c0_1, %c0_2] : memref<128x512xbf16, #tpu.memory_space<vmem>>, vector<128x512xbf16>
    %cst = arith.constant dense<0.000000e+00> : vector<2x512xf32>
    %2 = tpu.matmul %0, %1, %cst {dimension_numbers = #tpu.dot_dimension_numbers<[1], [0], [0], [1], [0, 0, 1, 1], [], []>} : vector<2x128xbf16>, vector<128x512xbf16>, vector<2x512xf32> -> vector<2x512xf32>
    %c0_3 = arith.constant 0 : index
    %c0_4 = arith.constant 0 : index
    %3 = vector.load %arg3[%c0_3, %c0_4] : memref<1x512xf32, #tpu.memory_space<vmem>>, vector<1x512xf32>
    %4 = vector.broadcast %3 : vector<1x512xf32> to vector<2x512xf32>
    %5 = arith.addf %2, %4 : vector<2x512xf32>
    %6 = math.tanh %5 : vector<2x512xf32>
    %7 = arith.truncf %6 : vector<2x512xf32> to vector<2x512xbf16>
    %c0_5 = arith.constant 0 : index
    %c0_6 = arith.constant 0 : index
    %8 = vector.load %arg4[%c0_5, %c0_6] : memref<512x384xbf16, #tpu.memory_space<vmem>>, vector<512x384xbf16>
    %cst_7 = arith.constant dense<0.000000e+00> : vector<2x384xf32>
    %9 = tpu.matmul %7, %8, %cst_7 {dimension_numbers = #tpu.dot_dimension_numbers<[1], [0], [0], [1], [0, 0, 1, 1], [], []>} : vector<2x512xbf16>, vector<512x384xbf16>, vector<2x384xf32> -> vector<2x384xf32>
    %c0_8 = arith.constant 0 : index
    %c0_9 = arith.constant 0 : index
    %10 = vector.load %arg5[%c0_8, %c0_9] : memref<1x384xf32, #tpu.memory_space<vmem>>, vector<1x384xf32>
    %11 = vector.broadcast %10 : vector<1x384xf32> to vector<2x384xf32>
    %12 = arith.addf %9, %11 : vector<2x384xf32>
    %13 = math.tanh %12 : vector<2x384xf32>
    %c0_10 = arith.constant 0 : index
    %c0_11 = arith.constant 0 : index
    %14 = vector.load %arg6[%c0_10, %c0_11] : memref<1x384xf32, #tpu.memory_space<vmem>>, vector<1x384xf32>
    %15 = vector.broadcast %14 : vector<1x384xf32> to vector<2x384xf32>
    %16 = arith.mulf %13, %15 : vector<2x384xf32>
    %cst_12 = arith.constant dense<0.000000e+00> : vector<2xf32>
    %17 = vector.multi_reduction <add>, %16, %cst_12 [1] : vector<2x384xf32> to vector<2xf32>
    %18 = vector.shape_cast %17 : vector<2xf32> to vector<2x1xf32>
    %c0_13 = arith.constant 0 : index
    %c0_14 = arith.constant 0 : index
    %19 = vector.load %arg7[%c0_13, %c0_14] : memref<1x1xf32, #tpu.memory_space<vmem>>, vector<1x1xf32>
    %20 = vector.broadcast %19 : vector<1x1xf32> to vector<2x1xf32>
    %21 = arith.addf %18, %20 : vector<2x1xf32>
    %22 = tpu.transpose %21, [1, 0] : vector<2x1xf32> -> vector<1x2xf32>
    %23 = arith.negf %22 : vector<1x2xf32>
    %24 = math.exp %23 : vector<1x2xf32>
    %cst_15 = arith.constant 1.000000e+00 : f32
    %25 = vector.broadcast %cst_15 : f32 to vector<1x2xf32>
    %26 = arith.addf %25, %24 : vector<1x2xf32>
    %27 = arith.divf %25, %26 : vector<1x2xf32>
    %c0_16 = arith.constant 0 : index
    %c0_17 = arith.constant 0 : index
    %28 = vector.load %arg8[%c0_16, %c0_17] : memref<1x2xf32, #tpu.memory_space<vmem>>, vector<1x2xf32>
    tpu.vector_store %arg8[%c0_16, %c0_17], %27 {strides = array<i32>} : memref<1x2xf32, #tpu.memory_space<vmem>>, vector<1x2xf32>,
    return
  }
  func.func @transform_0(%arg0: i32) -> (i32, i32) {
    %c0_i32 = arith.constant 0 : i32
    %c0_i32_0 = arith.constant 0 : i32
    return %arg0, %c0_i32 : i32, i32
  }
  func.func @transform_1(%arg0: i32) -> (i32, i32) {
    %c0_i32 = arith.constant 0 : i32
    %c0_i32_0 = arith.constant 0 : i32
    %c0_i32_1 = arith.constant 0 : i32
    return %c0_i32, %c0_i32_0 : i32, i32
  }
  func.func @transform_2(%arg0: i32) -> (i32, i32) {
    %c0_i32 = arith.constant 0 : i32
    %c0_i32_0 = arith.constant 0 : i32
    %c0_i32_1 = arith.constant 0 : i32
    return %c0_i32, %c0_i32_0 : i32, i32
  }
  func.func @transform_3(%arg0: i32) -> (i32, i32) {
    %c0_i32 = arith.constant 0 : i32
    %c0_i32_0 = arith.constant 0 : i32
    %c0_i32_1 = arith.constant 0 : i32
    return %c0_i32, %c0_i32_0 : i32, i32
  }
  func.func @transform_4(%arg0: i32) -> (i32, i32) {
    %c0_i32 = arith.constant 0 : i32
    %c0_i32_0 = arith.constant 0 : i32
    %c0_i32_1 = arith.constant 0 : i32
    return %c0_i32, %c0_i32_0 : i32, i32
  }
  func.func @transform_5(%arg0: i32) -> (i32, i32) {
    %c0_i32 = arith.constant 0 : i32
    %c0_i32_0 = arith.constant 0 : i32
    %c0_i32_1 = arith.constant 0 : i32
    return %c0_i32, %c0_i32_0 : i32, i32
  }
  func.func @transform_6(%arg0: i32) -> (i32, i32) {
    %c0_i32 = arith.constant 0 : i32
    %c0_i32_0 = arith.constant 0 : i32
    %c0_i32_1 = arith.constant 0 : i32
    return %c0_i32, %c0_i32_0 : i32, i32
  }
  func.func @transform_7(%arg0: i32) -> (i32, i32) {
    %c0_i32 = arith.constant 0 : i32
    %c0_i32_0 = arith.constant 0 : i32
    return %c0_i32, %arg0 : i32, i32
  }
}

</mosaic_0001>

<llo_original>
// kernel: discriminator_forward.1
$region0: #{discriminator_forward.1}
  #allocation0 [shape = 'u32[]', space=smem, size = 0x4, offset = 0x4, fixed_abs, tag = 'smem constant byte address 0x4 - core index']
  #allocation1 [shape = 'u32[144,128]{1,0:T(1,128)}', space=vmem, size = 0x12000, scoped, tag = 'internal scratch']
  #allocation2 [shape = 'f32[1,1]{1,0:T(1,128)S(1)}', space=vmem, size = 0x200, scoped, tag = 'scoped memory for discriminator_forward.1']
  %s0 = inlined_call_operand.vmem [shape: bf16[2,128], index: 0, kind: input, shape index: {}]
  %s1 = inlined_call_operand.hbm [shape: bf16[128,512], index: 1, kind: input, shape index: {}]
  %s2 = inlined_call_operand.vmem [shape: f32[1,512], index: 2, kind: input, shape index: {}]
  %s3 = inlined_call_operand.hbm [shape: bf16[512,384], index: 3, kind: input, shape index: {}]
  %s4 = inlined_call_operand.vmem [shape: f32[1,384], index: 4, kind: input, shape index: {}]
  %s5 = inlined_call_operand.vmem [shape: f32[1,384], index: 5, kind: input, shape index: {}]
  %s6 = inlined_call_operand.<no memory space> [shape: f32[1,1], index: 6, kind: input, shape index: {}]
  %s7 = inlined_call_operand.hbm [shape: f32[1,2], index: 7, kind: output, shape index: {}]
  %s8 = sld [smem:[#allocation0]]
  $region46: #{discriminator_forward.1} parent=0
    _
  %s10 = ssub.s32 1, %s8
  %s11 = scalar_select 0, %s10, %s8
  %v12 = vstv %s6
  %13 = vst [vmem:[#allocation2] sm:$0x1] %v12
  $region1: #{discriminator_forward.1} parent=0
    #allocation3 [shape = 'u8[131072]{0}', space=vmem, size = 0x20000, scoped, tag = 'input window, operand 1, single buffered']
    #allocation4 [shape = 's32[1]{0}', space=sflag, size = 0x4, scoped, tag = 'scoped memory for discriminator_forward.1']
    #allocation5 [shape = 's32[1]{0}', space=sflag, size = 0x4, scoped, tag = 'scoped memory for discriminator_forward.1']
    #allocation6 [shape = 'u8[393216]{0}', space=vmem, size = 0x60000, scoped, tag = 'input window, operand 3, single buffered']
    #allocation7 [shape = 's32[1]{0}', space=sflag, size = 0x4, scoped, tag = 'scoped memory for discriminator_forward.1']
    #allocation8 [shape = 'u8[512]{0}', space=vmem, size = 0x400, scoped, tag = 'output window, operand 0, single buffered']
    %14 = vsyncpa [#allocation4], 0
    %15 = vsyncpa [#allocation7], 0
    %16 = vsyncpa [#allocation5], 0
    // Predicated region
    $region2: #{discriminator_forward.1} parent=1 // pred_check
      _
    $region3: #{discriminator_forward.1} parent=1 // pred_check_branch
      %18 = sbr.rel (0) target = $region5
    $region4: #{discriminator_forward.1} parent=1 // pred_region
      _
    $region5: #{discriminator_forward.1} parent=1 // pred_fallthru
      _
    // Predicated region
    $region6: #{discriminator_forward.1} parent=1 // pred_check
      _
    $region7: #{discriminator_forward.1} parent=1 // pred_check_branch
      %20 = sbr.rel (0) target = $region9
    $region8: #{discriminator_forward.1} parent=1 // pred_region
      %s22 = ssub.s32 4096, 4096
      %23 = vsyncadd [#allocation4], %s22
      %s24 = sshll.u32 [#allocation3], 4
      %s25 = int_to_ptr.vmem [resolvable:$true] %s24
      %30 = dma.hbm_to_vmem [thread:$0]  %s1, 4096, %s25, [#allocation4], 256, 256, 16
    $region9: #{discriminator_forward.1} parent=1 // pred_fallthru
      _
    // Predicated region
    $region10: #{discriminator_forward.1} parent=1 // pred_check
      _
    $region11: #{discriminator_forward.1} parent=1 // pred_check_branch
      %32 = sbr.rel (0) target = $region13
    $region12: #{discriminator_forward.1} parent=1 // pred_region
      _
    $region13: #{discriminator_forward.1} parent=1 // pred_fallthru
      _
    // Predicated region
    $region14: #{discriminator_forward.1} parent=1 // pred_check
      _
    $region15: #{discriminator_forward.1} parent=1 // pred_check_branch
      %34 = sbr.rel (0) target = $region17
    $region16: #{discriminator_forward.1} parent=1 // pred_region
      %s36 = ssub.s32 12288, 12288
      %37 = vsyncadd [#allocation7], %s36
      %s38 = sshll.u32 [#allocation6], 4
      %s39 = int_to_ptr.vmem [resolvable:$true] %s38
      %44 = dma.hbm_to_vmem [thread:$0]  %s3, 12288, %s39, [#allocation7], 192, 192, 12
    $region17: #{discriminator_forward.1} parent=1 // pred_fallthru
      _
    // Predicated region
    $region18: #{discriminator_forward.1} parent=1 // pred_check
      _
    $region19: #{discriminator_forward.1} parent=1 // pred_check_branch
      %46 = sbr.rel (0) target = $region21
    $region20: #{discriminator_forward.1} parent=1 // pred_region
      _
    $region21: #{discriminator_forward.1} parent=1 // pred_fallthru
      _
    // Predicated region
    $region22: #{discriminator_forward.1} parent=1 // pred_check
      _
    $region23: #{discriminator_forward.1} parent=1 // pred_check_branch
      %48 = sbr.rel (0) target = $region25
    $region24: #{discriminator_forward.1} parent=1 // pred_region
      _
    $region25: #{discriminator_forward.1} parent=1 // pred_fallthru
      _
    // Predicated region
    $region26: #{discriminator_forward.1} parent=1 // pred_check
      _
    $region27: #{discriminator_forward.1} parent=1 // pred_check_branch
      %50 = sbr.rel (0) target = $region29
    $region28: #{discriminator_forward.1} parent=1 // pred_region
      _
    $region29: #{discriminator_forward.1} parent=1 // pred_fallthru
      _
    // Predicated region
    $region30: #{discriminator_forward.1} parent=1 // pred_check
      _
    $region31: #{discriminator_forward.1} parent=1 // pred_check_branch
      %52 = sbr.rel (0) target = $region33
    $region32: #{discriminator_forward.1} parent=1 // pred_region
      %53 = dma.done [#allocation4], 4096
    $region33: #{discriminator_forward.1} parent=1 // pred_fallthru
      _
    // Predicated region
    $region34: #{discriminator_forward.1} parent=1 // pred_check
      _
    $region35: #{discriminator_forward.1} parent=1 // pred_check_branch
      %55 = sbr.rel (0) target = $region37
    $region36: #{discriminator_forward.1} parent=1 // pred_region
      %56 = dma.done [#allocation7], 12288
    $region37: #{discriminator_forward.1} parent=1 // pred_fallthru
      _
    %v58 = vld [vmem:[%s0] sm:$0x1]
    %v59 = vld [vmem:[#allocation3] sm:$0xff]
    %v60 = vld [vmem:[#allocation3 + $0x8] sm:$0xff]
    %v61 = vld [vmem:[#allocation3 + $0x10] sm:$0xff]
    %v62 = vld [vmem:[#allocation3 + $0x18] sm:$0xff]
    %v63 = vld [vmem:[#allocation3 + $0x20] sm:$0xff]
    %v64 = vld [vmem:[#allocation3 + $0x28] sm:$0xff]
    %v65 = vld [vmem:[#allocation3 + $0x30] sm:$0xff]
    %v66 = vld [vmem:[#allocation3 + $0x38] sm:$0xff]
    %v67 = vld [vmem:[#allocation3 + $0x40] sm:$0xff]
    %v68 = vld [vmem:[#allocation3 + $0x48] sm:$0xff]
    %v69 = vld [vmem:[#allocation3 + $0x50] sm:$0xff]
    %v70 = vld [vmem:[#allocation3 + $0x58] sm:$0xff]
    %v71 = vld [vmem:[#allocation3 + $0x60] sm:$0xff]
    %v72 = vld [vmem:[#allocation3 + $0x68] sm:$0xff]
    %v73 = vld [vmem:[#allocation3 + $0x70] sm:$0xff]
    %v74 = vld [vmem:[#allocation3 + $0x78] sm:$0xff]
    %v75 = vld [vmem:[#allocation3 + $0x80] sm:$0xff]
    %v76 = vld [vmem:[#allocation3 + $0x88] sm:$0xff]
    %v77 = vld [vmem:[#allocation3 + $0x90] sm:$0xff]
    %v78 = vld [vmem:[#allocation3 + $0x98] sm:$0xff]
    %v79 = vld [vmem:[#allocation3 + $0xa0] sm:$0xff]
    %v80 = vld [vmem:[#allocation3 + $0xa8] sm:$0xff]
    %v81 = vld [vmem:[#allocation3 + $0xb0] sm:$0xff]
    %v82 = vld [vmem:[#allocation3 + $0xb8] sm:$0xff]
    %v83 = vld [vmem:[#allocation3 + $0xc0] sm:$0xff]
    %v84 = vld [vmem:[#allocation3 + $0xc8] sm:$0xff]
    %v85 = vld [vmem:[#allocation3 + $0xd0] sm:$0xff]
    %v86 = vld [vmem:[#allocation3 + $0xd8] sm:$0xff]
    %v87 = vld [vmem:[#allocation3 + $0xe0] sm:$0xff]
    %v88 = vld [vmem:[#allocation3 + $0xe8] sm:$0xff]
    %v89 = vld [vmem:[#allocation3 + $0xf0] sm:$0xff]
    %v90 = vld [vmem:[#allocation3 + $0xf8] sm:$0xff]
    %v91 = vld [vmem:[%s2] sm:$0xf]
    %v93 = vlaneseq
    %v94 = vshrl.u32 %v93, 7
    %v95 = vsub.s32 0, %v94
    %v96 = vrot.slane %v91, %v95
    %v97 = vlaneseq
    %v98 = vshrl.u32 %v97, 7
    %v99 = vsub.s32 1, %v98
    %v100 = vrot.slane %v91, %v99
    %v101 = vlaneseq
    %v102 = vshrl.u32 %v101, 7
    %v103 = vsub.s32 2, %v102
    %v104 = vrot.slane %v91, %v103
    %v105 = vlaneseq
    %v106 = vshrl.u32 %v105, 7
    %v107 = vsub.s32 3, %v106
    %v108 = vrot.slane %v91, %v107
    %v145 = vunpack.c.l.b16 %v59
    %v146 = vunpack.c.h.b16 %v59
    %v147 = vunpack.c.l.b16 %v60
    %v148 = vunpack.c.h.b16 %v60
    %v149 = vunpack.c.l.b16 %v61
    %v150 = vunpack.c.h.b16 %v61
    %v151 = vunpack.c.l.b16 %v62
    %v152 = vunpack.c.h.b16 %v62
    %v153 = vunpack.c.l.b16 %v63
    %v154 = vunpack.c.h.b16 %v63
    %v155 = vunpack.c.l.b16 %v64
    %v156 = vunpack.c.h.b16 %v64
    %v157 = vunpack.c.l.b16 %v65
    %v158 = vunpack.c.h.b16 %v65
    %v159 = vunpack.c.l.b16 %v66
    %v160 = vunpack.c.h.b16 %v66
    %v161 = vunpack.c.l.b16 %v67
    %v162 = vunpack.c.h.b16 %v67
    %v163 = vunpack.c.l.b16 %v68
    %v164 = vunpack.c.h.b16 %v68
    %v165 = vunpack.c.l.b16 %v69
    %v166 = vunpack.c.h.b16 %v69
    %v167 = vunpack.c.l.b16 %v70
    %v168 = vunpack.c.h.b16 %v70
    %v169 = vunpack.c.l.b16 %v71
    %v170 = vunpack.c.h.b16 %v71
    %v171 = vunpack.c.l.b16 %v72
    %v172 = vunpack.c.h.b16 %v72
    %v173 = vunpack.c.l.b16 %v73
    %v174 = vunpack.c.h.b16 %v73
    %v175 = vunpack.c.l.b16 %v74
    %v176 = vunpack.c.h.b16 %v74
    %v177 = vunpack.c.l.b16 %v75
    %v178 = vunpack.c.h.b16 %v75
    %v179 = vunpack.c.l.b16 %v76
    %v180 = vunpack.c.h.b16 %v76
    %v181 = vunpack.c.l.b16 %v77
    %v182 = vunpack.c.h.b16 %v77
    %v183 = vunpack.c.l.b16 %v78
    %v184 = vunpack.c.h.b16 %v78
    %v185 = vunpack.c.l.b16 %v79
    %v186 = vunpack.c.h.b16 %v79
    %v187 = vunpack.c.l.b16 %v80
    %v188 = vunpack.c.h.b16 %v80
    %v189 = vunpack.c.l.b16 %v81
    %v190 = vunpack.c.h.b16 %v81
    %v191 = vunpack.c.l.b16 %v82
    %v192 = vunpack.c.h.b16 %v82
    %v193 = vunpack.c.l.b16 %v83
    %v194 = vunpack.c.h.b16 %v83
    %v195 = vunpack.c.l.b16 %v84
    %v196 = vunpack.c.h.b16 %v84
    %v197 = vunpack.c.l.b16 %v85
    %v198 = vunpack.c.h.b16 %v85
    %v199 = vunpack.c.l.b16 %v86
    %v200 = vunpack.c.h.b16 %v86
    %v201 = vunpack.c.l.b16 %v87
    %v202 = vunpack.c.h.b16 %v87
    %v203 = vunpack.c.l.b16 %v88
    %v204 = vunpack.c.h.b16 %v88
    %v205 = vunpack.c.l.b16 %v89
    %v206 = vunpack.c.h.b16 %v89
    %v207 = vunpack.c.l.b16 %v90
    %v208 = vunpack.c.h.b16 %v90
    %v209 = vpack.c.b16 %v149, %v145
    %v210 = vpack.c.b16 %v150, %v146
    %v211 = vpack.c.b16 %v151, %v147
    %v212 = vpack.c.b16 %v152, %v148
    %v213 = vpack.c.b16 %v157, %v153
    %v214 = vpack.c.b16 %v158, %v154
    %v215 = vpack.c.b16 %v159, %v155
    %v216 = vpack.c.b16 %v160, %v156
    %v217 = vpack.c.b16 %v165, %v161
    %v218 = vpack.c.b16 %v166, %v162
    %v219 = vpack.c.b16 %v167, %v163
    %v220 = vpack.c.b16 %v168, %v164
    %v221 = vpack.c.b16 %v173, %v169
    %v222 = vpack.c.b16 %v174, %v170
    %v223 = vpack.c.b16 %v175, %v171
    %v224 = vpack.c.b16 %v176, %v172
    %v225 = vpack.c.b16 %v181, %v177
    %v226 = vpack.c.b16 %v182, %v178
    %v227 = vpack.c.b16 %v183, %v179
    %v228 = vpack.c.b16 %v184, %v180
    %v229 = vpack.c.b16 %v189, %v185
    %v230 = vpack.c.b16 %v190, %v186
    %v231 = vpack.c.b16 %v191, %v187
    %v232 = vpack.c.b16 %v192, %v188
    %v233 = vpack.c.b16 %v197, %v193
    %v234 = vpack.c.b16 %v198, %v194
    %v235 = vpack.c.b16 %v199, %v195
    %v236 = vpack.c.b16 %v200, %v196
    %v237 = vpack.c.b16 %v205, %v201
    %v238 = vpack.c.b16 %v206, %v202
    %v239 = vpack.c.b16 %v207, %v203
    %v240 = vpack.c.b16 %v208, %v204
    %273 = vmatprep.subr.bf16.mxu0 %v238
    %274 = vmatpush1.bf16.msra.mxu0 %v237
    %275 = vmatprep.subr.bf16.mxu0 %v234
    %276 = vmatpush1.bf16.msra.mxu0 %v233
    %277 = vmatprep.subr.bf16.mxu0 %v230
    %278 = vmatpush1.bf16.msra.mxu0 %v229
    %279 = vmatprep.subr.bf16.mxu0 %v226
    %280 = vmatpush1.bf16.msra.mxu0 %v225
    %281 = vmatprep.subr.bf16.mxu0 %v222
    %282 = vmatpush1.bf16.msra.mxu0 %v221
    %283 = vmatprep.subr.bf16.mxu0 %v218
    %284 = vmatpush1.bf16.msra.mxu0 %v217
    %285 = vmatprep.subr.bf16.mxu0 %v214
    %286 = vmatpush1.bf16.msra.mxu0 %v213
    %287 = vmatprep.subr.bf16.mxu0 %v210
    %288 = vmatpush1.bf16.msra.mxu0 %v209
    %289 = vmatprep.subr.bf16.mxu0 0
    %290 = vmatpush2.bf16.msra.mxu0 0
    %291 = vmatprep.subr.bf16.mxu0 0
    %292 = vmatpush2.bf16.msra.mxu0 0
    %293 = vmatprep.subr.bf16.mxu0 0
    %294 = vmatpush2.bf16.msra.mxu0 0
    %295 = vmatprep.subr.bf16.mxu0 0
    %296 = vmatpush2.bf16.msra.mxu0 0
    %297 = vmatprep.subr.bf16.mxu0 0
    %298 = vmatpush2.bf16.msra.mxu0 0
    %299 = vmatprep.subr.bf16.mxu0 0
    %300 = vmatpush2.bf16.msra.mxu0 0
    %301 = vmatprep.subr.bf16.mxu0 0
    %302 = vmatpush2.bf16.msra.mxu0 0
    %303 = vmatprep.subr.bf16.mxu0 0
    %304 = vmatpush2.bf16.msra.mxu0 0
    %305 = vmatprep.mubr.bf16.mxu0 0
    %306 = vmatmul.mubr.bf16.gmra.mxu0 %v58
    %v307 = vpop.f32.mrf.mxu0
    %v308 = vadd.f32 %v96, %v307
    %v309 = vpop.f32.mrf.mxu0
    %v310 = vadd.f32 %v100, %v309
    %v311 = vpop.f32.mrf.mxu0
    %v312 = vpop.f32.mrf.mxu0
    %313 = vdwg.mxu0
    %314 = vmatprep.subr.bf16.mxu0 %v240
    %315 = vmatpush1.bf16.msra.mxu0 %v239
    %316 = vmatprep.subr.bf16.mxu0 %v236
    %317 = vmatpush1.bf16.msra.mxu0 %v235
    %318 = vmatprep.subr.bf16.mxu0 %v232
    %319 = vmatpush1.bf16.msra.mxu0 %v231
    %320 = vmatprep.subr.bf16.mxu0 %v228
    %321 = vmatpush1.bf16.msra.mxu0 %v227
    %322 = vmatprep.subr.bf16.mxu0 %v224
    %323 = vmatpush1.bf16.msra.mxu0 %v223
    %324 = vmatprep.subr.bf16.mxu0 %v220
    %325 = vmatpush1.bf16.msra.mxu0 %v219
    %326 = vmatprep.subr.bf16.mxu0 %v216
    %327 = vmatpush1.bf16.msra.mxu0 %v215
    %328 = vmatprep.subr.bf16.mxu0 %v212
    %329 = vmatpush1.bf16.msra.mxu0 %v211
    %330 = vmatprep.subr.bf16.mxu0 0
    %331 = vmatpush2.bf16.msra.mxu0 0
    %332 = vmatprep.subr.bf16.mxu0 0
    %333 = vmatpush2.bf16.msra.mxu0 0
    %334 = vmatprep.subr.bf16.mxu0 0
    %335 = vmatpush2.bf16.msra.mxu0 0
    %336 = vmatprep.subr.bf16.mxu0 0
    %337 = vmatpush2.bf16.msra.mxu0 0
    %338 = vmatprep.subr.bf16.mxu0 0
    %339 = vmatpush2.bf16.msra.mxu0 0
    %340 = vmatprep.subr.bf16.mxu0 0
    %341 = vmatpush2.bf16.msra.mxu0 0
    %342 = vmatprep.subr.bf16.mxu0 0
    %343 = vmatpush2.bf16.msra.mxu0 0
    %344 = vmatprep.subr.bf16.mxu0 0
    %345 = vmatpush2.bf16.msra.mxu0 0
    %346 = vmatprep.mubr.bf16.mxu0 0
    %347 = vmatmul.mubr.bf16.gmra.mxu0 %v58
    %v348 = vpop.f32.mrf.mxu0
    %v349 = vadd.f32 %v104, %v348
    %v350 = vpop.f32.mrf.mxu0
    %v351 = vadd.f32 %v108, %v350
    %v352 = vpop.f32.mrf.mxu0
    %v353 = vpop.f32.mrf.mxu0
    %354 = vdwg.mxu0
    %v355 = vtanh.pop %v308
    %v356 = vtanh.pop %v310
    %v357 = vtanh.pop %v349
    %v358 = vtanh.pop %v351
    %v359 = vpack.c.bf16 %v355, %v355
    %v360 = vpack.c.bf16 %v356, %v356
    %v361 = vpack.c.bf16 %v357, %v357
    %v362 = vpack.c.bf16 %v358, %v358
    %v363 = vld [vmem:[#allocation6] sm:$0xff]
    %v364 = vld [vmem:[#allocation6 + $0x8] sm:$0xf]
    %v365 = vld [vmem:[#allocation6 + $0xc] sm:$0xff]
    %v366 = vld [vmem:[#allocation6 + $0x14] sm:$0xf]
    %v367 = vld [vmem:[#allocation6 + $0x18] sm:$0xff]
    %v368 = vld [vmem:[#allocation6 + $0x20] sm:$0xf]
    %v369 = vld [vmem:[#allocation6 + $0x24] sm:$0xff]
    %v370 = vld [vmem:[#allocation6 + $0x2c] sm:$0xf]
    %v371 = vld [vmem:[#allocation6 + $0x30] sm:$0xff]
    %v372 = vld [vmem:[#allocation6 + $0x38] sm:$0xf]
    %v373 = vld [vmem:[#allocation6 + $0x3c] sm:$0xff]
    %v374 = vld [vmem:[#allocation6 + $0x44] sm:$0xf]
    %v375 = vld [vmem:[#allocation6 + $0x48] sm:$0xff]
    %v376 = vld [vmem:[#allocation6 + $0x50] sm:$0xf]
    %v377 = vld [vmem:[#allocation6 + $0x54] sm:$0xff]
    %v378 = vld [vmem:[#allocation6 + $0x5c] sm:$0xf]
    %v379 = vld [vmem:[#allocation6 + $0x60] sm:$0xff]
    %v380 = vld [vmem:[#allocation6 + $0x68] sm:$0xf]
    %v381 = vld [vmem:[#allocation6 + $0x6c] sm:$0xff]
    %v382 = vld [vmem:[#allocation6 + $0x74] sm:$0xf]
    %v383 = vld [vmem:[#allocation6 + $0x78] sm:$0xff]
    %v384 = vld [vmem:[#allocation6 + $0x80] sm:$0xf]
    %v385 = vld [vmem:[#allocation6 + $0x84] sm:$0xff]
    %v386 = vld [vmem:[#allocation6 + $0x8c] sm:$0xf]
    %v387 = vld [vmem:[#allocation6 + $0x90] sm:$0xff]
    %v388 = vld [vmem:[#allocation6 + $0x98] sm:$0xf]
    %v389 = vld [vmem:[#allocation6 + $0x9c] sm:$0xff]
    %v390 = vld [vmem:[#allocation6 + $0xa4] sm:$0xf]
    %v391 = vld [vmem:[#allocation6 + $0xa8] sm:$0xff]
    %v392 = vld [vmem:[#allocation6 + $0xb0] sm:$0xf]
    %v393 = vld [vmem:[#allocation6 + $0xb4] sm:$0xff]
    %v394 = vld [vmem:[#allocation6 + $0xbc] sm:$0xf]
    %v395 = vld [vmem:[#allocation6 + $0xc0] sm:$0xff]
    %v396 = vld [vmem:[#allocation6 + $0xc8] sm:$0xf]
    %v397 = vld [vmem:[#allocation6 + $0xcc] sm:$0xff]
    %v398 = vld [vmem:[#allocation6 + $0xd4] sm:$0xf]
    %v399 = vld [vmem:[#allocation6 + $0xd8] sm:$0xff]
    %v400 = vld [vmem:[#allocation6 + $0xe0] sm:$0xf]
    %v401 = vld [vmem:[#allocation6 + $0xe4] sm:$0xff]
    %v402 = vld [vmem:[#allocation6 + $0xec] sm:$0xf]
    %v403 = vld [vmem:[#allocation6 + $0xf0] sm:$0xff]
    %v404 = vld [vmem:[#allocation6 + $0xf8] sm:$0xf]
    %v405 = vld [vmem:[#allocation6 + $0xfc] sm:$0xff]
    %v406 = vld [vmem:[#allocation6 + $0x104] sm:$0xf]
    %v407 = vld [vmem:[#allocation6 + $0x108] sm:$0xff]
    %v408 = vld [vmem:[#allocation6 + $0x110] sm:$0xf]
    %v409 = vld [vmem:[#allocation6 + $0x114] sm:$0xff]
    %v410 = vld [vmem:[#allocation6 + $0x11c] sm:$0xf]
    %v411 = vld [vmem:[#allocation6 + $0x120] sm:$0xff]
    %v412 = vld [vmem:[#allocation6 + $0x128] sm:$0xf]
    %v413 = vld [vmem:[#allocation6 + $0x12c] sm:$0xff]
    %v414 = vld [vmem:[#allocation6 + $0x134] sm:$0xf]
    %v415 = vld [vmem:[#allocation6 + $0x138] sm:$0xff]
    %v416 = vld [vmem:[#allocation6 + $0x140] sm:$0xf]
    %v417 = vld [vmem:[#allocation6 + $0x144] sm:$0xff]
    %v418 = vld [vmem:[#allocation6 + $0x14c] sm:$0xf]
    %v419 = vld [vmem:[#allocation6 + $0x150] sm:$0xff]
    %v420 = vld [vmem:[#allocation6 + $0x158] sm:$0xf]
    %v421 = vld [vmem:[#allocation6 + $0x15c] sm:$0xff]
    %v422 = vld [vmem:[#allocation6 + $0x164] sm:$0xf]
    %v423 = vld [vmem:[#allocation6 + $0x168] sm:$0xff]
    %v424 = vld [vmem:[#allocation6 + $0x170] sm:$0xf]
    %v425 = vld [vmem:[#allocation6 + $0x174] sm:$0xff]
    %v426 = vld [vmem:[#allocation6 + $0x17c] sm:$0xf]
    %v427 = vld [vmem:[#allocation6 + $0x180] sm:$0xff]
    %v428 = vld [vmem:[#allocation6 + $0x188] sm:$0xf]
    %v429 = vld [vmem:[#allocation6 + $0x18c] sm:$0xff]
    %v430 = vld [vmem:[#allocation6 + $0x194] sm:$0xf]
    %v431 = vld [vmem:[#allocation6 + $0x198] sm:$0xff]
    %v432 = vld [vmem:[#allocation6 + $0x1a0] sm:$0xf]
    %v433 = vld [vmem:[#allocation6 + $0x1a4] sm:$0xff]
    %v434 = vld [vmem:[#allocation6 + $0x1ac] sm:$0xf]
    %v435 = vld [vmem:[#allocation6 + $0x1b0] sm:$0xff]
    %v436 = vld [vmem:[#allocation6 + $0x1b8] sm:$0xf]
    %v437 = vld [vmem:[#allocation6 + $0x1bc] sm:$0xff]
    %v438 = vld [vmem:[#allocation6 + $0x1c4] sm:$0xf]
    %v439 = vld [vmem:[#allocation6 + $0x1c8] sm:$0xff]
    %v440 = vld [vmem:[#allocation6 + $0x1d0] sm:$0xf]
    %v441 = vld [vmem:[#allocation6 + $0x1d4] sm:$0xff]
    %v442 = vld [vmem:[#allocation6 + $0x1dc] sm:$0xf]
    %v443 = vld [vmem:[#allocation6 + $0x1e0] sm:$0xff]
    %v444 = vld [vmem:[#allocation6 + $0x1e8] sm:$0xf]
    %v445 = vld [vmem:[#allocation6 + $0x1ec] sm:$0xff]
    %v446 = vld [vmem:[#allocation6 + $0x1f4] sm:$0xf]
    %v447 = vld [vmem:[#allocation6 + $0x1f8] sm:$0xff]
    %v448 = vld [vmem:[#allocation6 + $0x200] sm:$0xf]
    %v449 = vld [vmem:[#allocation6 + $0x204] sm:$0xff]
    %v450 = vld [vmem:[#allocation6 + $0x20c] sm:$0xf]
    %v451 = vld [vmem:[#allocation6 + $0x210] sm:$0xff]
    %v452 = vld [vmem:[#allocation6 + $0x218] sm:$0xf]
    %v453 = vld [vmem:[#allocation6 + $0x21c] sm:$0xff]
    %v454 = vld [vmem:[#allocation6 + $0x224] sm:$0xf]
    %v455 = vld [vmem:[#allocation6 + $0x228] sm:$0xff]
    %v456 = vld [vmem:[#allocation6 + $0x230] sm:$0xf]
    %v457 = vld [vmem:[#allocation6 + $0x234] sm:$0xff]
    %v458 = vld [vmem:[#allocation6 + $0x23c] sm:$0xf]
    %v459 = vld [vmem:[#allocation6 + $0x240] sm:$0xff]
    %v460 = vld [vmem:[#allocation6 + $0x248] sm:$0xf]
    %v461 = vld [vmem:[#allocation6 + $0x24c] sm:$0xff]
    %v462 = vld [vmem:[#allocation6 + $0x254] sm:$0xf]
    %v463 = vld [vmem:[#allocation6 + $0x258] sm:$0xff]
    %v464 = vld [vmem:[#allocation6 + $0x260] sm:$0xf]
    %v465 = vld [vmem:[#allocation6 + $0x264] sm:$0xff]
    %v466 = vld [vmem:[#allocation6 + $0x26c] sm:$0xf]
    %v467 = vld [vmem:[#allocation6 + $0x270] sm:$0xff]
    %v468 = vld [vmem:[#allocation6 + $0x278] sm:$0xf]
    %v469 = vld [vmem:[#allocation6 + $0x27c] sm:$0xff]
    %v470 = vld [vmem:[#allocation6 + $0x284] sm:$0xf]
    %v471 = vld [vmem:[#allocation6 + $0x288] sm:$0xff]
    %v472 = vld [vmem:[#allocation6 + $0x290] sm:$0xf]
    %v473 = vld [vmem:[#allocation6 + $0x294] sm:$0xff]
    %v474 = vld [vmem:[#allocation6 + $0x29c] sm:$0xf]
    %v475 = vld [vmem:[#allocation6 + $0x2a0] sm:$0xff]
    %v476 = vld [vmem:[#allocation6 + $0x2a8] sm:$0xf]
    %v477 = vld [vmem:[#allocation6 + $0x2ac] sm:$0xff]
    %v478 = vld [vmem:[#allocation6 + $0x2b4] sm:$0xf]
    %v479 = vld [vmem:[#allocation6 + $0x2b8] sm:$0xff]
    %v480 = vld [vmem:[#allocation6 + $0x2c0] sm:$0xf]
    %v481 = vld [vmem:[#allocation6 + $0x2c4] sm:$0xff]
    %v482 = vld [vmem:[#allocation6 + $0x2cc] sm:$0xf]
    %v483 = vld [vmem:[#allocation6 + $0x2d0] sm:$0xff]
    %v484 = vld [vmem:[#allocation6 + $0x2d8] sm:$0xf]
    %v485 = vld [vmem:[#allocation6 + $0x2dc] sm:$0xff]
    %v486 = vld [vmem:[#allocation6 + $0x2e4] sm:$0xf]
    %v487 = vld [vmem:[#allocation6 + $0x2e8] sm:$0xff]
    %v488 = vld [vmem:[#allocation6 + $0x2f0] sm:$0xf]
    %v489 = vld [vmem:[#allocation6 + $0x2f4] sm:$0xff]
    %v490 = vld [vmem:[#allocation6 + $0x2fc] sm:$0xf]
    %v491 = vld [vmem:[%s4] sm:$0x7]
    %v493 = vlaneseq
    %v494 = vshrl.u32 %v493, 7
    %v495 = vsub.s32 0, %v494
    %v496 = vrot.slane %v491, %v495
    %v497 = vlaneseq
    %v498 = vshrl.u32 %v497, 7
    %v499 = vsub.s32 1, %v498
    %v500 = vrot.slane %v491, %v499
    %v501 = vlaneseq
    %v502 = vshrl.u32 %v501, 7
    %v503 = vsub.s32 2, %v502
    %v504 = vrot.slane %v491, %v503
    %v636 = vunpack.c.l.b16 %v363
    %v637 = vunpack.c.h.b16 %v363
    %v638 = vunpack.c.l.b16 %v364
    %v639 = vunpack.c.l.b16 %v365
    %v640 = vunpack.c.h.b16 %v365
    %v641 = vunpack.c.l.b16 %v366
    %v642 = vunpack.c.l.b16 %v367
    %v643 = vunpack.c.h.b16 %v367
    %v644 = vunpack.c.l.b16 %v368
    %v645 = vunpack.c.l.b16 %v369
    %v646 = vunpack.c.h.b16 %v369
    %v647 = vunpack.c.l.b16 %v370
    %v648 = vunpack.c.l.b16 %v371
    %v649 = vunpack.c.h.b16 %v371
    %v650 = vunpack.c.l.b16 %v372
    %v651 = vunpack.c.l.b16 %v373
    %v652 = vunpack.c.h.b16 %v373
    %v653 = vunpack.c.l.b16 %v374
    %v654 = vunpack.c.l.b16 %v375
    %v655 = vunpack.c.h.b16 %v375
    %v656 = vunpack.c.l.b16 %v376
    %v657 = vunpack.c.l.b16 %v377
    %v658 = vunpack.c.h.b16 %v377
    %v659 = vunpack.c.l.b16 %v378
    %v660 = vunpack.c.l.b16 %v379
    %v661 = vunpack.c.h.b16 %v379
    %v662 = vunpack.c.l.b16 %v380
    %v663 = vunpack.c.l.b16 %v381
    %v664 = vunpack.c.h.b16 %v381
    %v665 = vunpack.c.l.b16 %v382
    %v666 = vunpack.c.l.b16 %v383
    %v667 = vunpack.c.h.b16 %v383
    %v668 = vunpack.c.l.b16 %v384
    %v669 = vunpack.c.l.b16 %v385
    %v670 = vunpack.c.h.b16 %v385
    %v671 = vunpack.c.l.b16 %v386
    %v672 = vunpack.c.l.b16 %v387
    %v673 = vunpack.c.h.b16 %v387
    %v674 = vunpack.c.l.b16 %v388
    %v675 = vunpack.c.l.b16 %v389
    %v676 = vunpack.c.h.b16 %v389
    %v677 = vunpack.c.l.b16 %v390
    %v678 = vunpack.c.l.b16 %v391
    %v679 = vunpack.c.h.b16 %v391
    %v680 = vunpack.c.l.b16 %v392
    %v681 = vunpack.c.l.b16 %v393
    %v682 = vunpack.c.h.b16 %v393
    %v683 = vunpack.c.l.b16 %v394
    %v684 = vunpack.c.l.b16 %v395
    %v685 = vunpack.c.h.b16 %v395
    %v686 = vunpack.c.l.b16 %v396
    %v687 = vunpack.c.l.b16 %v397
    %v688 = vunpack.c.h.b16 %v397
    %v689 = vunpack.c.l.b16 %v398
    %v690 = vunpack.c.l.b16 %v399
    %v691 = vunpack.c.h.b16 %v399
    %v692 = vunpack.c.l.b16 %v400
    %v693 = vunpack.c.l.b16 %v401
    %v694 = vunpack.c.h.b16 %v401
    %v695 = vunpack.c.l.b16 %v402
    %v696 = vunpack.c.l.b16 %v403
    %v697 = vunpack.c.h.b16 %v403
    %v698 = vunpack.c.l.b16 %v404
    %v699 = vunpack.c.l.b16 %v405
    %v700 = vunpack.c.h.b16 %v405
    %v701 = vunpack.c.l.b16 %v406
    %v702 = vunpack.c.l.b16 %v407
    %v703 = vunpack.c.h.b16 %v407
    %v704 = vunpack.c.l.b16 %v408
    %v705 = vunpack.c.l.b16 %v409
    %v706 = vunpack.c.h.b16 %v409
    %v707 = vunpack.c.l.b16 %v410
    %v708 = vunpack.c.l.b16 %v411
    %v709 = vunpack.c.h.b16 %v411
    %v710 = vunpack.c.l.b16 %v412
    %v711 = vunpack.c.l.b16 %v413
    %v712 = vunpack.c.h.b16 %v413
    %v713 = vunpack.c.l.b16 %v414
    %v714 = vunpack.c.l.b16 %v415
    %v715 = vunpack.c.h.b16 %v415
    %v716 = vunpack.c.l.b16 %v416
    %v717 = vunpack.c.l.b16 %v417
    %v718 = vunpack.c.h.b16 %v417
    %v719 = vunpack.c.l.b16 %v418
    %v720 = vunpack.c.l.b16 %v419
    %v721 = vunpack.c.h.b16 %v419
    %v722 = vunpack.c.l.b16 %v420
    %v723 = vunpack.c.l.b16 %v421
    %v724 = vunpack.c.h.b16 %v421
    %v725 = vunpack.c.l.b16 %v422
    %v726 = vunpack.c.l.b16 %v423
    %v727 = vunpack.c.h.b16 %v423
    %v728 = vunpack.c.l.b16 %v424
    %v729 = vunpack.c.l.b16 %v425
    %v730 = vunpack.c.h.b16 %v425
    %v731 = vunpack.c.l.b16 %v426
    %v732 = vunpack.c.l.b16 %v427
    %v733 = vunpack.c.h.b16 %v427
    %v734 = vunpack.c.l.b16 %v428
    %v735 = vunpack.c.l.b16 %v429
    %v736 = vunpack.c.h.b16 %v429
    %v737 = vunpack.c.l.b16 %v430
    %v738 = vunpack.c.l.b16 %v431
    %v739 = vunpack.c.h.b16 %v431
    %v740 = vunpack.c.l.b16 %v432
    %v741 = vunpack.c.l.b16 %v433
    %v742 = vunpack.c.h.b16 %v433
    %v743 = vunpack.c.l.b16 %v434
    %v744 = vunpack.c.l.b16 %v435
    %v745 = vunpack.c.h.b16 %v435
    %v746 = vunpack.c.l.b16 %v436
    %v747 = vunpack.c.l.b16 %v437
    %v748 = vunpack.c.h.b16 %v437
    %v749 = vunpack.c.l.b16 %v438
    %v750 = vunpack.c.l.b16 %v439
    %v751 = vunpack.c.h.b16 %v439
    %v752 = vunpack.c.l.b16 %v440
    %v753 = vunpack.c.l.b16 %v441
    %v754 = vunpack.c.h.b16 %v441
    %v755 = vunpack.c.l.b16 %v442
    %v756 = vunpack.c.l.b16 %v443
    %v757 = vunpack.c.h.b16 %v443
    %v758 = vunpack.c.l.b16 %v444
    %v759 = vunpack.c.l.b16 %v445
    %v760 = vunpack.c.h.b16 %v445
    %v761 = vunpack.c.l.b16 %v446
    %v762 = vunpack.c.l.b16 %v447
    %v763 = vunpack.c.h.b16 %v447
    %v764 = vunpack.c.l.b16 %v448
    %v765 = vunpack.c.l.b16 %v449
    %v766 = vunpack.c.h.b16 %v449
    %v767 = vunpack.c.l.b16 %v450
    %v768 = vunpack.c.l.b16 %v451
    %v769 = vunpack.c.h.b16 %v451
    %v770 = vunpack.c.l.b16 %v452
    %v771 = vunpack.c.l.b16 %v453
    %v772 = vunpack.c.h.b16 %v453
    %v773 = vunpack.c.l.b16 %v454
    %v774 = vunpack.c.l.b16 %v455
    %v775 = vunpack.c.h.b16 %v455
    %v776 = vunpack.c.l.b16 %v456
    %v777 = vunpack.c.l.b16 %v457
    %v778 = vunpack.c.h.b16 %v457
    %v779 = vunpack.c.l.b16 %v458
    %v780 = vunpack.c.l.b16 %v459
    %v781 = vunpack.c.h.b16 %v459
    %v782 = vunpack.c.l.b16 %v460
    %v783 = vunpack.c.l.b16 %v461
    %v784 = vunpack.c.h.b16 %v461
    %v785 = vunpack.c.l.b16 %v462
    %v786 = vunpack.c.l.b16 %v463
    %v787 = vunpack.c.h.b16 %v463
    %v788 = vunpack.c.l.b16 %v464
    %v789 = vunpack.c.l.b16 %v465
    %v790 = vunpack.c.h.b16 %v465
    %v791 = vunpack.c.l.b16 %v466
    %v792 = vunpack.c.l.b16 %v467
    %v793 = vunpack.c.h.b16 %v467
    %v794 = vunpack.c.l.b16 %v468
    %v795 = vunpack.c.l.b16 %v469
    %v796 = vunpack.c.h.b16 %v469
    %v797 = vunpack.c.l.b16 %v470
    %v798 = vunpack.c.l.b16 %v471
    %v799 = vunpack.c.h.b16 %v471
    %v800 = vunpack.c.l.b16 %v472
    %v801 = vunpack.c.l.b16 %v473
    %v802 = vunpack.c.h.b16 %v473
    %v803 = vunpack.c.l.b16 %v474
    %v804 = vunpack.c.l.b16 %v475
    %v805 = vunpack.c.h.b16 %v475
    %v806 = vunpack.c.l.b16 %v476
    %v807 = vunpack.c.l.b16 %v477
    %v808 = vunpack.c.h.b16 %v477
    %v809 = vunpack.c.l.b16 %v478
    %v810 = vunpack.c.l.b16 %v479
    %v811 = vunpack.c.h.b16 %v479
    %v812 = vunpack.c.l.b16 %v480
    %v813 = vunpack.c.l.b16 %v481
    %v814 = vunpack.c.h.b16 %v481
    %v815 = vunpack.c.l.b16 %v482
    %v816 = vunpack.c.l.b16 %v483
    %v817 = vunpack.c.h.b16 %v483
    %v818 = vunpack.c.l.b16 %v484
    %v819 = vunpack.c.l.b16 %v485
    %v820 = vunpack.c.h.b16 %v485
    %v821 = vunpack.c.l.b16 %v486
    %v822 = vunpack.c.l.b16 %v487
    %v823 = vunpack.c.h.b16 %v487
    %v824 = vunpack.c.l.b16 %v488
    %v825 = vunpack.c.l.b16 %v489
    %v826 = vunpack.c.h.b16 %v489
    %v827 = vunpack.c.l.b16 %v490
    %v828 = vpack.c.b16 %v639, %v636
    %v829 = vpack.c.b16 %v640, %v637
    %v830 = vpack.c.b16 %v641, %v638
    %v831 = vpack.c.b16 %v645, %v642
    %v832 = vpack.c.b16 %v646, %v643
    %v833 = vpack.c.b16 %v647, %v644
    %v834 = vpack.c.b16 %v651, %v648
    %v835 = vpack.c.b16 %v652, %v649
    %v836 = vpack.c.b16 %v653, %v650
    %v837 = vpack.c.b16 %v657, %v654
    %v838 = vpack.c.b16 %v658, %v655
    %v839 = vpack.c.b16 %v659, %v656
    %v840 = vpack.c.b16 %v663, %v660
    %v841 = vpack.c.b16 %v664, %v661
    %v842 = vpack.c.b16 %v665, %v662
    %v843 = vpack.c.b16 %v669, %v666
    %v844 = vpack.c.b16 %v670, %v667
    %v845 = vpack.c.b16 %v671, %v668
    %v846 = vpack.c.b16 %v675, %v672
    %v847 = vpack.c.b16 %v676, %v673
    %v848 = vpack.c.b16 %v677, %v674
    %v849 = vpack.c.b16 %v681, %v678
    %v850 = vpack.c.b16 %v682, %v679
    %v851 = vpack.c.b16 %v683, %v680
    %v852 = vpack.c.b16 %v687, %v684
    %v853 = vpack.c.b16 %v688, %v685
    %v854 = vpack.c.b16 %v689, %v686
    %v855 = vpack.c.b16 %v693, %v690
    %v856 = vpack.c.b16 %v694, %v691
    %v857 = vpack.c.b16 %v695, %v692
    %v858 = vpack.c.b16 %v699, %v696
    %v859 = vpack.c.b16 %v700, %v697
    %v860 = vpack.c.b16 %v701, %v698
    %v861 = vpack.c.b16 %v705, %v702
    %v862 = vpack.c.b16 %v706, %v703
    %v863 = vpack.c.b16 %v707, %v704
    %v864 = vpack.c.b16 %v711, %v708
    %v865 = vpack.c.b16 %v712, %v709
    %v866 = vpack.c.b16 %v713, %v710
    %v867 = vpack.c.b16 %v717, %v714
    %v868 = vpack.c.b16 %v718, %v715
    %v869 = vpack.c.b16 %v719, %v716
    %v870 = vpack.c.b16 %v723, %v720
    %v871 = vpack.c.b16 %v724, %v721
    %v872 = vpack.c.b16 %v725, %v722
    %v873 = vpack.c.b16 %v729, %v726
    %v874 = vpack.c.b16 %v730, %v727
    %v875 = vpack.c.b16 %v731, %v728
    %v876 = vpack.c.b16 %v735, %v732
    %v877 = vpack.c.b16 %v736, %v733
    %v878 = vpack.c.b16 %v737, %v734
    %v879 = vpack.c.b16 %v741, %v738
    %v880 = vpack.c.b16 %v742, %v739
    %v881 = vpack.c.b16 %v743, %v740
    %v882 = vpack.c.b16 %v747, %v744
    %v883 = vpack.c.b16 %v748, %v745
    %v884 = vpack.c.b16 %v749, %v746
    %v885 = vpack.c.b16 %v753, %v750
    %v886 = vpack.c.b16 %v754, %v751
    %v887 = vpack.c.b16 %v755, %v752
    %v888 = vpack.c.b16 %v759, %v756
    %v889 = vpack.c.b16 %v760, %v757
    %v890 = vpack.c.b16 %v761, %v758
    %v891 = vpack.c.b16 %v765, %v762
    %v892 = vpack.c.b16 %v766, %v763
    %v893 = vpack.c.b16 %v767, %v764
    %v894 = vpack.c.b16 %v771, %v768
    %v895 = vpack.c.b16 %v772, %v769
    %v896 = vpack.c.b16 %v773, %v770
    %v897 = vpack.c.b16 %v777, %v774
    %v898 = vpack.c.b16 %v778, %v775
    %v899 = vpack.c.b16 %v779, %v776
    %v900 = vpack.c.b16 %v783, %v780
    %v901 = vpack.c.b16 %v784, %v781
    %v902 = vpack.c.b16 %v785, %v782
    %v903 = vpack.c.b16 %v789, %v786
    %v904 = vpack.c.b16 %v790, %v787
    %v905 = vpack.c.b16 %v791, %v788
    %v906 = vpack.c.b16 %v795, %v792
    %v907 = vpack.c.b16 %v796, %v793
    %v908 = vpack.c.b16 %v797, %v794
    %v909 = vpack.c.b16 %v801, %v798
    %v910 = vpack.c.b16 %v802, %v799
    %v911 = vpack.c.b16 %v803, %v800
    %v912 = vpack.c.b16 %v807, %v804
    %v913 = vpack.c.b16 %v808, %v805
    %v914 = vpack.c.b16 %v809, %v806
    %v915 = vpack.c.b16 %v813, %v810
    %v916 = vpack.c.b16 %v814, %v811
    %v917 = vpack.c.b16 %v815, %v812
    %v918 = vpack.c.b16 %v819, %v816
    %v919 = vpack.c.b16 %v820, %v817
    %v920 = vpack.c.b16 %v821, %v818
    %v921 = vpack.c.b16 %v825, %v822
    %v922 = vpack.c.b16 %v826, %v823
    %v923 = vpack.c.b16 %v827, %v824
    %1020 = vmatprep.subr.bf16.mxu0 %v850
    %1021 = vmatpush1.bf16.msra.mxu0 %v849
    %1022 = vmatprep.subr.bf16.mxu0 %v847
    %1023 = vmatpush1.bf16.msra.mxu0 %v846
    %1024 = vmatprep.subr.bf16.mxu0 %v844
    %1025 = vmatpush1.bf16.msra.mxu0 %v843
    %1026 = vmatprep.subr.bf16.mxu0 %v841
    %1027 = vmatpush1.bf16.msra.mxu0 %v840
    %1028 = vmatprep.subr.bf16.mxu0 %v838
    %1029 = vmatpush1.bf16.msra.mxu0 %v837
    %1030 = vmatprep.subr.bf16.mxu0 %v835
    %1031 = vmatpush1.bf16.msra.mxu0 %v834
    %1032 = vmatprep.subr.bf16.mxu0 %v832
    %1033 = vmatpush1.bf16.msra.mxu0 %v831
    %1034 = vmatprep.subr.bf16.mxu0 %v829
    %1035 = vmatpush1.bf16.msra.mxu0 %v828
    %1036 = vmatprep.subr.bf16.mxu0 %v874
    %1037 = vmatpush2.bf16.msra.mxu0 %v873
    %1038 = vmatprep.subr.bf16.mxu0 %v871
    %1039 = vmatpush2.bf16.msra.mxu0 %v870
    %1040 = vmatprep.subr.bf16.mxu0 %v868
    %1041 = vmatpush2.bf16.msra.mxu0 %v867
    %1042 = vmatprep.subr.bf16.mxu0 %v865
    %1043 = vmatpush2.bf16.msra.mxu0 %v864
    %1044 = vmatprep.subr.bf16.mxu0 %v862
    %1045 = vmatpush2.bf16.msra.mxu0 %v861
    %1046 = vmatprep.subr.bf16.mxu0 %v859
    %1047 = vmatpush2.bf16.msra.mxu0 %v858
    %1048 = vmatprep.subr.bf16.mxu0 %v856
    %1049 = vmatpush2.bf16.msra.mxu0 %v855
    %1050 = vmatprep.subr.bf16.mxu0 %v853
    %1051 = vmatpush2.bf16.msra.mxu0 %v852
    %1052 = vmatprep.mubr.bf16.mxu0 %v360
    %1053 = vmatmul.mubr.bf16.gmra.mxu0 %v359
    %v1054 = vpop.f32.mrf.mxu0
    %v1055 = vadd.f32 %v496, %v1054
    %v1056 = vpop.f32.mrf.mxu0
    %v1057 = vadd.f32 %v500, %v1056
    %v1058 = vpop.f32.mrf.mxu0
    %v1059 = vpop.f32.mrf.mxu0
    %1060 = vdwg.mxu0
    %1061 = vmatprep.subr.bf16.mxu0 %v898
    %1062 = vmatpush1.bf16.msra.mxu0 %v897
    %1063 = vmatprep.subr.bf16.mxu0 %v895
    %1064 = vmatpush1.bf16.msra.mxu0 %v894
    %1065 = vmatprep.subr.bf16.mxu0 %v892
    %1066 = vmatpush1.bf16.msra.mxu0 %v891
    %1067 = vmatprep.subr.bf16.mxu0 %v889
    %1068 = vmatpush1.bf16.msra.mxu0 %v888
    %1069 = vmatprep.subr.bf16.mxu0 %v886
    %1070 = vmatpush1.bf16.msra.mxu0 %v885
    %1071 = vmatprep.subr.bf16.mxu0 %v883
    %1072 = vmatpush1.bf16.msra.mxu0 %v882
    %1073 = vmatprep.subr.bf16.mxu0 %v880
    %1074 = vmatpush1.bf16.msra.mxu0 %v879
    %1075 = vmatprep.subr.bf16.mxu0 %v877
    %1076 = vmatpush1.bf16.msra.mxu0 %v876
    %1077 = vmatprep.subr.bf16.mxu0 %v922
    %1078 = vmatpush2.bf16.msra.mxu0 %v921
    %1079 = vmatprep.subr.bf16.mxu0 %v919
    %1080 = vmatpush2.bf16.msra.mxu0 %v918
    %1081 = vmatprep.subr.bf16.mxu0 %v916
    %1082 = vmatpush2.bf16.msra.mxu0 %v915
    %1083 = vmatprep.subr.bf16.mxu0 %v913
    %1084 = vmatpush2.bf16.msra.mxu0 %v912
    %1085 = vmatprep.subr.bf16.mxu0 %v910
    %1086 = vmatpush2.bf16.msra.mxu0 %v909
    %1087 = vmatprep.subr.bf16.mxu0 %v907
    %1088 = vmatpush2.bf16.msra.mxu0 %v906
    %1089 = vmatprep.subr.bf16.mxu0 %v904
    %1090 = vmatpush2.bf16.msra.mxu0 %v903
    %1091 = vmatprep.subr.bf16.mxu0 %v901
    %1092 = vmatpush2.bf16.msra.mxu0 %v900
    %1093 = vmatprep.mubr.bf16.mxu0 %v362
    %1094 = vmatmul.mubr.bf16.gmra.mxu0 %v361
    %v1095 = vpop.f32.mrf.mxu0
    %v1096 = vadd.f32 %v1055, %v1095
    %v1097 = vpop.f32.mrf.mxu0
    %v1098 = vadd.f32 %v1057, %v1097
    %v1099 = vpop.f32.mrf.mxu0
    %v1100 = vpop.f32.mrf.mxu0
    %1101 = vdwg.mxu0
    %1102 = vmatprep.subr.bf16.mxu0 0
    %1103 = vmatpush1.bf16.msra.mxu0 %v851
    %1104 = vmatprep.subr.bf16.mxu0 0
    %1105 = vmatpush1.bf16.msra.mxu0 %v848
    %1106 = vmatprep.subr.bf16.mxu0 0
    %1107 = vmatpush1.bf16.msra.mxu0 %v845
    %1108 = vmatprep.subr.bf16.mxu0 0
    %1109 = vmatpush1.bf16.msra.mxu0 %v842
    %1110 = vmatprep.subr.bf16.mxu0 0
    %1111 = vmatpush1.bf16.msra.mxu0 %v839
    %1112 = vmatprep.subr.bf16.mxu0 0
    %1113 = vmatpush1.bf16.msra.mxu0 %v836
    %1114 = vmatprep.subr.bf16.mxu0 0
    %1115 = vmatpush1.bf16.msra.mxu0 %v833
    %1116 = vmatprep.subr.bf16.mxu0 0
    %1117 = vmatpush1.bf16.msra.mxu0 %v830
    %1118 = vmatprep.subr.bf16.mxu0 0
    %1119 = vmatpush2.bf16.msra.mxu0 %v875
    %1120 = vmatprep.subr.bf16.mxu0 0
    %1121 = vmatpush2.bf16.msra.mxu0 %v872
    %1122 = vmatprep.subr.bf16.mxu0 0
    %1123 = vmatpush2.bf16.msra.mxu0 %v869
    %1124 = vmatprep.subr.bf16.mxu0 0
    %1125 = vmatpush2.bf16.msra.mxu0 %v866
    %1126 = vmatprep.subr.bf16.mxu0 0
    %1127 = vmatpush2.bf16.msra.mxu0 %v863
    %1128 = vmatprep.subr.bf16.mxu0 0
    %1129 = vmatpush2.bf16.msra.mxu0 %v860
    %1130 = vmatprep.subr.bf16.mxu0 0
    %1131 = vmatpush2.bf16.msra.mxu0 %v857
    %1132 = vmatprep.subr.bf16.mxu0 0
    %1133 = vmatpush2.bf16.msra.mxu0 %v854
    %1134 = vmatprep.mubr.bf16.mxu0 %v360
    %1135 = vmatmul.mubr.bf16.gmra.mxu0 %v359
    %v1136 = vpop.f32.mrf.mxu0
    %v1137 = vadd.f32 %v504, %v1136
    %v1138 = vpop.f32.mrf.mxu0
    %v1139 = vpop.f32.mrf.mxu0
    %v1140 = vpop.f32.mrf.mxu0
    %1141 = vdwg.mxu0
    %1142 = vmatprep.subr.bf16.mxu0 0
    %1143 = vmatpush1.bf16.msra.mxu0 %v899
    %1144 = vmatprep.subr.bf16.mxu0 0
    %1145 = vmatpush1.bf16.msra.mxu0 %v896
    %1146 = vmatprep.subr.bf16.mxu0 0
    %1147 = vmatpush1.bf16.msra.mxu0 %v893
    %1148 = vmatprep.subr.bf16.mxu0 0
    %1149 = vmatpush1.bf16.msra.mxu0 %v890
    %1150 = vmatprep.subr.bf16.mxu0 0
    %1151 = vmatpush1.bf16.msra.mxu0 %v887
    %1152 = vmatprep.subr.bf16.mxu0 0
    %1153 = vmatpush1.bf16.msra.mxu0 %v884
    %1154 = vmatprep.subr.bf16.mxu0 0
    %1155 = vmatpush1.bf16.msra.mxu0 %v881
    %1156 = vmatprep.subr.bf16.mxu0 0
    %1157 = vmatpush1.bf16.msra.mxu0 %v878
    %1158 = vmatprep.subr.bf16.mxu0 0
    %1159 = vmatpush2.bf16.msra.mxu0 %v923
    %1160 = vmatprep.subr.bf16.mxu0 0
    %1161 = vmatpush2.bf16.msra.mxu0 %v920
    %1162 = vmatprep.subr.bf16.mxu0 0
    %1163 = vmatpush2.bf16.msra.mxu0 %v917
    %1164 = vmatprep.subr.bf16.mxu0 0
    %1165 = vmatpush2.bf16.msra.mxu0 %v914
    %1166 = vmatprep.subr.bf16.mxu0 0
    %1167 = vmatpush2.bf16.msra.mxu0 %v911
    %1168 = vmatprep.subr.bf16.mxu0 0
    %1169 = vmatpush2.bf16.msra.mxu0 %v908
    %1170 = vmatprep.subr.bf16.mxu0 0
    %1171 = vmatpush2.bf16.msra.mxu0 %v905
    %1172 = vmatprep.subr.bf16.mxu0 0
    %1173 = vmatpush2.bf16.msra.mxu0 %v902
    %1174 = vmatprep.mubr.bf16.mxu0 %v362
    %1175 = vmatmul.mubr.bf16.gmra.mxu0 %v361
    %v1176 = vpop.f32.mrf.mxu0
    %v1177 = vadd.f32 %v1137, %v1176
    %v1178 = vpop.f32.mrf.mxu0
    %v1179 = vpop.f32.mrf.mxu0
    %v1180 = vpop.f32.mrf.mxu0
    %1181 = vdwg.mxu0
    %v1182 = vtanh.pop %v1096
    %v1183 = vtanh.pop %v1098
    %v1184 = vtanh.pop %v1177
    %v1185 = vld [vmem:[%s5] sm:$0x7]
    %v1187 = vlaneseq
    %v1188 = vshrl.u32 %v1187, 7
    %v1189 = vsub.s32 0, %v1188
    %v1190 = vrot.slane %v1185, %v1189
    %v1191 = vlaneseq
    %v1192 = vshrl.u32 %v1191, 7
    %v1193 = vsub.s32 1, %v1192
    %v1194 = vrot.slane %v1185, %v1193
    %v1195 = vlaneseq
    %v1196 = vshrl.u32 %v1195, 7
    %v1197 = vsub.s32 2, %v1196
    %v1198 = vrot.slane %v1185, %v1197
    %v1202 = vmul.f32 %v1182, %v1190
    %v1203 = vmul.f32 %v1183, %v1194
    %v1204 = vmul.f32 %v1184, %v1198
    %vm1205 = vcmask 1041408
    %v1206 = vsel %vm1205, %v1202, 0.0
    %v1207 = vsel %vm1205, %v1203, 0.0
    %v1208 = vadd.f32 %v1206, %v1207
    %v1209 = vsel %vm1205, %v1204, 0.0
    %v1210 = vadd.f32 %v1208, %v1209
    %1211 = vadd.xlane.f32.xlu0 %v1210
    %v1212 = vpop.xlane.xlu0 %1211
    %v1213 = vld [vmem:[#allocation2] sm:$0x1]
    %v1215 = vlaneseq
    %v1216 = vshrl.u32 %v1215, 7
    %v1217 = vsub.s32 0, %v1216
    %v1218 = vrot.slane %v1213, %v1217
    %v1220 = vadd.f32 %v1212, %v1218
    %1221 = vxpose.xlu0.b32.start [1/16] %v1220, 128
    %1222 = vxpose.xlu0.b32.cont [2/16] 0.0, 128
    %1223 = vxpose.xlu0.b32.cont [3/16] 0.0, 128
    %1224 = vxpose.xlu0.b32.cont [4/16] 0.0, 128
    %1225 = vxpose.xlu0.b32.cont [5/16] 0.0, 128
    %1226 = vxpose.xlu0.b32.cont [6/16] 0.0, 128
    %1227 = vxpose.xlu0.b32.cont [7/16] 0.0, 128
    %1228 = vxpose.xlu0.b32.cont [8/16] 0.0, 128
    %1229 = vxpose.xlu0.b32.cont [9/16] 0.0, 128
    %1230 = vxpose.xlu0.b32.cont [10/16] 0.0, 128
    %1231 = vxpose.xlu0.b32.cont [11/16] 0.0, 128
    %1232 = vxpose.xlu0.b32.cont [12/16] 0.0, 128
    %1233 = vxpose.xlu0.b32.cont [13/16] 0.0, 128
    %1234 = vxpose.xlu0.b32.cont [14/16] 0.0, 128
    %1235 = vxpose.xlu0.b32.cont [15/16] 0.0, 128
    %1236 = vxpose.xlu0.b32.end [16/16] 0.0, 128
    %v1237 = vpop.trf.xlu0
    %v1238 = vpop.trf.xlu0
    %v1239 = vpop.trf.xlu0
    %v1240 = vpop.trf.xlu0
    %v1241 = vpop.trf.xlu0
    %v1242 = vpop.trf.xlu0
    %v1243 = vpop.trf.xlu0
    %v1244 = vpop.trf.xlu0
    %v1245 = vpop.trf.xlu0
    %v1246 = vpop.trf.xlu0
    %v1247 = vpop.trf.xlu0
    %v1248 = vpop.trf.xlu0
    %v1249 = vpop.trf.xlu0
    %v1250 = vpop.trf.xlu0
    %v1251 = vpop.trf.xlu0
    %v1252 = vpop.trf.xlu0
    %v1253 = vxor.u32 %v1237, 2147483648
    %v1254 = vmul.f32 %v1253, 1.442695
    %v1255 = vpow.pop %v1254
    %v1256 = vadd.f32 %v1255, 1.0
    %v1257 = vrcp.pop %v1256
    %v1258 = vmul.f32 1.0, %v1257
    %vm1259 = vcmask 8192
    %1260 = vst.msk [vmem:[#allocation8] sm:$0x1] %vm1259, %v1258
    // Predicated region
    $region38: #{discriminator_forward.1} parent=1 // pred_check
      _
    $region39: #{discriminator_forward.1} parent=1 // pred_check_branch
      %1262 = sbr.rel (0) target = $region41
    $region40: #{discriminator_forward.1} parent=1 // pred_region
      %s1264 = ssub.s32 16, 16
      %1265 = vsyncadd [#allocation5], %s1264
      %s1267 = sshll.u32 [#allocation8], 4
      %s1268 = int_to_ptr.vmem [resolvable:$true] %s1267
      %1270 = dma.vmem_to_hbm [thread:$0]  %s1268, 16, %s7, [#allocation5]
    $region41: #{discriminator_forward.1} parent=1 // pred_fallthru
      _
    // Predicated region
    $region42: #{discriminator_forward.1} parent=1 // pred_check
      _
    $region43: #{discriminator_forward.1} parent=1 // pred_check_branch
      %1272 = sbr.rel (0) target = $region45
    $region44: #{discriminator_forward.1} parent=1 // pred_region
      %1273 = dma.done [#allocation5], 16
    $region45: #{discriminator_forward.1} parent=1 // pred_fallthru
      _
    %1274 = vsyncpa [#allocation4], 1
    %1275 = vsyncpa [#allocation7], 1
    %1276 = vsyncpa [#allocation5], 1

</llo_original>
